<compile_context>
chip_gen: v7x
topology: tpu7x:2x2x1
jax: 0.10.0
libtpu: 0.0.40
codegen_flags: <defaults>
</compile_context>

<pallas_src>
import math

import jax
import jax.numpy as jnp
from jax.experimental import pallas as pl
from jax.experimental.pallas import tpu as pltpu

H1, H2 = 400, 300            # logical hidden sizes (PyTorch module)
H1P, H2P = 512, 384          # lane-aligned padded hidden sizes


def _round_up(n, m):
    return ((n + m - 1) // m) * m


def _pad_to(a, shape):
    return jnp.pad(a, [(0, t - s) for s, t in zip(a.shape, shape)])


def critic_kernel(x_ref, u_ref, w1x_ref, w1u_ref, b1_ref, w2_ref, b2_ref,
                  w3_ref, b3_ref, out_ref):
    # Cast activations to bf16 in-kernel (free VPU slack, no wrapper HBM pass).
    xb = x_ref[...].astype(jnp.bfloat16)
    ub = u_ref[...].astype(jnp.bfloat16)

    # l1: split-weight matmuls (bf16 operands, f32 accumulate) — no concat.
    h1 = jnp.dot(xb, w1x_ref[...], preferred_element_type=jnp.float32)
    h1 = h1 + jnp.dot(ub, w1u_ref[...], preferred_element_type=jnp.float32)
    h1 = jnp.maximum(h1 + b1_ref[...], 0.0)                    # (tb, 512)

    # l2: (tb, 512) @ (512, 384) + b2, ReLU. Padded lanes stay exactly 0.
    h2 = jnp.dot(h1.astype(jnp.bfloat16), w2_ref[...],
                 preferred_element_type=jnp.float32)
    h2 = jnp.maximum(h2 + b2_ref[...], 0.0)                    # (tb, 384)

    # l3: N=1 output -> VPU broadcast-mul + lane reduction (padded w3 lanes are
    # zero). Store lane-dense: (tb,) column result relayouted to a (1, tb) row.
    q = jnp.sum(h2 * w3_ref[...], axis=-1) + b3_ref[0, 0]      # (tb,)
    out_ref[...] = q[None, :].astype(out_ref.dtype)            # (1, tb)


def prepare_critic_params(params, state_dim):
    """One-time weight prep: split W1, zero-pad hidden dims, cast to kernel
    dtypes. Call once outside the per-step path."""
    w1, b1, w2, b2, w3, b3 = params
    w1x = _pad_to(w1[:state_dim], (state_dim, H1P)).astype(jnp.bfloat16)
    w1u = _pad_to(w1[state_dim:], (w1.shape[0] - state_dim, H1P)).astype(jnp.bfloat16)
    b1p = _pad_to(b1.reshape(1, -1), (1, H1P)).astype(jnp.float32)
    w2p = _pad_to(w2, (H1P, H2P)).astype(jnp.bfloat16)
    b2p = _pad_to(b2.reshape(1, -1), (1, H2P)).astype(jnp.float32)
    w3p = _pad_to(w3.reshape(1, -1), (1, H2P)).astype(jnp.float32)
    b3s = b3.reshape(1, 1).astype(jnp.float32)
    return (w1x, w1u, b1p, w2p, b2p, w3p, b3s)


def _choose_tiling(B):
    """Return (padded_batch, batch_tile)."""
    if B <= 128:
        bp = _round_up(max(B, 8), 16)
        return bp, bp                      # single full tile (block == array)
    # Multi-tile: tb must be a multiple of 128 so the lane-dense (1, tb) out
    # block is legal; keep >=2 tiles so both v7x TensorCores get work, cap at
    # 1024 rows (weights are VMEM-resident, only tiny x/u/out tiles move).
    tb = min(1024, _round_up(pl.cdiv(B, 2), 128))
    bp = _round_up(B, tb)
    return bp, tb


def critic_forward(x, u, prepped):
    """x: (B, state_dim) f32, u: (B, action_dim) f32 -> (B, 1) f32 Q-values."""
    w1x, w1u, b1p, w2p, b2p, w3p, b3s = prepped
    B, state_dim = x.shape
    action_dim = u.shape[1]

    bp, tb = _choose_tiling(B)
    if bp != B:
        x = jnp.pad(x, ((0, bp - B), (0, 0)))
        u = jnp.pad(u, ((0, bp - B), (0, 0)))
    n_tiles = bp // tb

    out = pl.pallas_call(
        critic_kernel,
        out_shape=jax.ShapeDtypeStruct((1, bp), jnp.float32),
        grid=(n_tiles,),
        in_specs=[
            pl.BlockSpec((tb, state_dim), lambda i: (i, 0)),       # x tile (f32)
            pl.BlockSpec((tb, action_dim), lambda i: (i, 0)),      # u tile (f32)
            pl.BlockSpec((state_dim, H1P), lambda i: (0, 0)),      # w1_x (resident)
            pl.BlockSpec((action_dim, H1P), lambda i: (0, 0)),     # w1_u (resident)
            pl.BlockSpec((1, H1P), lambda i: (0, 0)),              # b1
            pl.BlockSpec((H1P, H2P), lambda i: (0, 0)),            # w2 (resident)
            pl.BlockSpec((1, H2P), lambda i: (0, 0)),              # b2
            pl.BlockSpec((1, H2P), lambda i: (0, 0)),              # w3 row
            pl.BlockSpec(memory_space=pltpu.MemorySpace.SMEM),     # b3 scalar
        ],
        out_specs=pl.BlockSpec((1, tb), lambda i: (0, i)),         # lane-dense row
        compiler_params=pltpu.CompilerParams(
            dimension_semantics=("parallel",)),
    )(x, u, w1x, w1u, b1p, w2p, b2p, w3p, b3s)
    return out.reshape(bp, 1)[:B]


def init_critic_params(key, state_dim, action_dim):
    """nn.Linear default init, weights pre-transposed to (in, out), f32."""
    dims = [(state_dim + action_dim, H1), (H1, H2), (H2, 1)]
    params = []
    for fan_in, fan_out in dims:
        key, kw, kb = jax.random.split(key, 3)
        bound = 1.0 / math.sqrt(fan_in)
        w = jax.random.uniform(kw, (fan_in, fan_out), jnp.float32, -bound, bound)
        b = jax.random.uniform(kb, (1, fan_out), jnp.float32, -bound, bound)
        params += [w, b]
    return tuple(params)


def critic_reference_f32(x, u, params):
    """Pure f32 reference (matches the PyTorch module exactly)."""
    w1, b1, w2, b2, w3, b3 = params
    h = jnp.concatenate([x, u], axis=1)
    h = jnp.maximum(h @ w1 + b1, 0.0)
    h = jnp.maximum(h @ w2 + b2, 0.0)
    return h @ w3 + b3


def critic_reference_matched(x, u, params, state_dim):
    """Reference with the same bf16 operand casting as the kernel."""
    w1, b1, w2, b2, w3, b3 = params
    xb = x.astype(jnp.bfloat16)
    ub = u.astype(jnp.bfloat16)
    h1 = (jnp.dot(xb, w1[:state_dim].astype(jnp.bfloat16),
                  preferred_element_type=jnp.float32)
          + jnp.dot(ub, w1[state_dim:].astype(jnp.bfloat16),
                    preferred_element_type=jnp.float32))
    h1 = jnp.maximum(h1 + b1, 0.0)
    h2 = jnp.dot(h1.astype(jnp.bfloat16), w2.astype(jnp.bfloat16),
                 preferred_element_type=jnp.float32)
    h2 = jnp.maximum(h2 + b2, 0.0)
    return jnp.sum(h2 * w3.reshape(1, H2), axis=-1, keepdims=True) + b3


if __name__ == "__main__":
    batch, state_dim, action_dim = 2, 16, 4

    key = jax.random.PRNGKey(0)
    kx, ku, kp = jax.random.split(key, 3)
    x = jax.random.normal(kx, (batch, state_dim), jnp.float32)
    u = jax.random.normal(ku, (batch, action_dim), jnp.float32)
    params = init_critic_params(kp, state_dim, action_dim)
    prepped = prepare_critic_params(params, state_dim)   # one-time prep

    # Small-batch (single-tile) path.
    q = critic_forward(x, u, prepped)
    jax.block_until_ready(q)
    assert q.shape == (batch, 1)
    q_matched = critic_reference_matched(x, u, params, state_dim)
    assert jnp.allclose(q, q_matched, atol=1e-3, rtol=1e-3)
    q_f32 = critic_reference_f32(x, u, params)
    assert jnp.allclose(q, q_f32, atol=5e-2, rtol=5e-2)

    # Larger-batch (padded, 2 parallel tiles) path.
    kx2, ku2 = jax.random.split(jax.random.PRNGKey(1), 2)
    B2 = 260
    x2 = jax.random.normal(kx2, (B2, state_dim), jnp.float32)
    u2 = jax.random.normal(ku2, (B2, action_dim), jnp.float32)
    q2 = critic_forward(x2, u2, prepped)
    jax.block_until_ready(q2)
    assert q2.shape == (B2, 1)
    q2_matched = critic_reference_matched(x2, u2, params, state_dim)
    assert jnp.allclose(q2, q2_matched, atol=1e-3, rtol=1e-3)

    print("KERNEL_OK")
</pallas_src>

<mosaic_0001>
module attributes {stable_mosaic.version = 11 : i64} {
  func.func @critic_kernel(%arg0: i32, %arg1: memref<16x16xf32, #tpu.memory_space<vmem>>, %arg2: memref<16x4xf32, #tpu.memory_space<vmem>>, %arg3: memref<16x512xbf16, #tpu.memory_space<vmem>>, %arg4: memref<4x512xbf16, #tpu.memory_space<vmem>>, %arg5: memref<1x512xf32, #tpu.memory_space<vmem>>, %arg6: memref<512x384xbf16, #tpu.memory_space<vmem>>, %arg7: memref<1x384xf32, #tpu.memory_space<vmem>>, %arg8: memref<1x384xf32, #tpu.memory_space<vmem>>, %arg9: memref<1x1xf32, #tpu.memory_space<smem>>, %arg10: memref<1x16xf32, #tpu.memory_space<vmem>>) attributes {dimension_semantics = [#tpu.dimension_semantics<parallel>], iteration_bounds = array<i64: 1>, scalar_prefetch = 0 : i64, scratch_operands = 0 : i64, tpu.core_type = #tpu.core_type<tc>, window_params = [{transform_indices = @transform_0, window_bounds = array<i64: 16, 16>}, {transform_indices = @transform_1, window_bounds = array<i64: 16, 4>}, {pipeline_mode = #tpu.pipeline_mode<synchronous>, transform_indices = @transform_2, window_bounds = array<i64: 16, 512>}, {pipeline_mode = #tpu.pipeline_mode<synchronous>, transform_indices = @transform_3, window_bounds = array<i64: 4, 512>}, {pipeline_mode = #tpu.pipeline_mode<synchronous>, transform_indices = @transform_4, window_bounds = array<i64: 1, 512>}, {pipeline_mode = #tpu.pipeline_mode<synchronous>, transform_indices = @transform_5, window_bounds = array<i64: 512, 384>}, {pipeline_mode = #tpu.pipeline_mode<synchronous>, transform_indices = @transform_6, window_bounds = array<i64: 1, 384>}, {pipeline_mode = #tpu.pipeline_mode<synchronous>, transform_indices = @transform_7, window_bounds = array<i64: 1, 384>}, {transform_indices = @transform_8, window_bounds = array<i64: 1, 1>}, {transform_indices = @transform_9, window_bounds = array<i64: 1, 16>}]} {
    %c0 = arith.constant 0 : index
    %c0_0 = arith.constant 0 : index
    %0 = vector.load %arg1[%c0, %c0_0] : memref<16x16xf32, #tpu.memory_space<vmem>>, vector<16x16xf32>
    %1 = arith.truncf %0 : vector<16x16xf32> to vector<16x16xbf16>
    %c0_1 = arith.constant 0 : index
    %c0_2 = arith.constant 0 : index
    %2 = vector.load %arg2[%c0_1, %c0_2] : memref<16x4xf32, #tpu.memory_space<vmem>>, vector<16x4xf32>
    %3 = arith.truncf %2 : vector<16x4xf32> to vector<16x4xbf16>
    %c0_3 = arith.constant 0 : index
    %c0_4 = arith.constant 0 : index
    %4 = vector.load %arg3[%c0_3, %c0_4] : memref<16x512xbf16, #tpu.memory_space<vmem>>, vector<16x512xbf16>
    %cst = arith.constant dense<0.000000e+00> : vector<16x512xf32>
    %5 = tpu.matmul %1, %4, %cst {dimension_numbers = #tpu.dot_dimension_numbers<[1], [0], [0], [1], [0, 0, 1, 1], [], []>} : vector<16x16xbf16>, vector<16x512xbf16>, vector<16x512xf32> -> vector<16x512xf32>
    %c0_5 = arith.constant 0 : index
    %c0_6 = arith.constant 0 : index
    %6 = vector.load %arg4[%c0_5, %c0_6] : memref<4x512xbf16, #tpu.memory_space<vmem>>, vector<4x512xbf16>
    %cst_7 = arith.constant dense<0.000000e+00> : vector<16x512xf32>
    %7 = tpu.matmul %3, %6, %cst_7 {dimension_numbers = #tpu.dot_dimension_numbers<[1], [0], [0], [1], [0, 0, 1, 1], [], []>} : vector<16x4xbf16>, vector<4x512xbf16>, vector<16x512xf32> -> vector<16x512xf32>
    %8 = arith.addf %5, %7 : vector<16x512xf32>
    %c0_8 = arith.constant 0 : index
    %c0_9 = arith.constant 0 : index
    %9 = vector.load %arg5[%c0_8, %c0_9] : memref<1x512xf32, #tpu.memory_space<vmem>>, vector<1x512xf32>
    %10 = vector.broadcast %9 : vector<1x512xf32> to vector<16x512xf32>
    %11 = arith.addf %8, %10 : vector<16x512xf32>
    %cst_10 = arith.constant 0.000000e+00 : f32
    %12 = vector.broadcast %cst_10 : f32 to vector<16x512xf32>
    %13 = arith.maximumf %11, %12 : vector<16x512xf32>
    %14 = arith.truncf %13 : vector<16x512xf32> to vector<16x512xbf16>
    %c0_11 = arith.constant 0 : index
    %c0_12 = arith.constant 0 : index
    %15 = vector.load %arg6[%c0_11, %c0_12] : memref<512x384xbf16, #tpu.memory_space<vmem>>, vector<512x384xbf16>
    %cst_13 = arith.constant dense<0.000000e+00> : vector<16x384xf32>
    %16 = tpu.matmul %14, %15, %cst_13 {dimension_numbers = #tpu.dot_dimension_numbers<[1], [0], [0], [1], [0, 0, 1, 1], [], []>} : vector<16x512xbf16>, vector<512x384xbf16>, vector<16x384xf32> -> vector<16x384xf32>
    %c0_14 = arith.constant 0 : index
    %c0_15 = arith.constant 0 : index
    %17 = vector.load %arg7[%c0_14, %c0_15] : memref<1x384xf32, #tpu.memory_space<vmem>>, vector<1x384xf32>
    %18 = vector.broadcast %17 : vector<1x384xf32> to vector<16x384xf32>
    %19 = arith.addf %16, %18 : vector<16x384xf32>
    %cst_16 = arith.constant 0.000000e+00 : f32
    %20 = vector.broadcast %cst_16 : f32 to vector<16x384xf32>
    %21 = arith.maximumf %19, %20 : vector<16x384xf32>
    %c0_17 = arith.constant 0 : index
    %c0_18 = arith.constant 0 : index
    %22 = vector.load %arg8[%c0_17, %c0_18] : memref<1x384xf32, #tpu.memory_space<vmem>>, vector<1x384xf32>
    %23 = vector.broadcast %22 : vector<1x384xf32> to vector<16x384xf32>
    %24 = arith.mulf %21, %23 : vector<16x384xf32>
    %cst_19 = arith.constant dense<0.000000e+00> : vector<16xf32>
    %25 = vector.multi_reduction <add>, %24, %cst_19 [1] : vector<16x384xf32> to vector<16xf32>
    %c0_20 = arith.constant 0 : index
    %c0_21 = arith.constant 0 : index
    %26 = memref.load %arg9[%c0_20, %c0_21] : memref<1x1xf32, #tpu.memory_space<smem>>
    %27 = vector.broadcast %26 : f32 to vector<16xf32>
    %28 = arith.addf %25, %27 : vector<16xf32>
    %29 = vector.shape_cast %28 : vector<16xf32> to vector<1x16xf32>
    %c0_22 = arith.constant 0 : index
    %c0_23 = arith.constant 0 : index
    %30 = vector.load %arg10[%c0_22, %c0_23] : memref<1x16xf32, #tpu.memory_space<vmem>>, vector<1x16xf32>
    tpu.vector_store %arg10[%c0_22, %c0_23], %29 {strides = array<i32>} : memref<1x16xf32, #tpu.memory_space<vmem>>, vector<1x16xf32>,
    return
  }
  func.func @transform_0(%arg0: i32) -> (i32, i32) {
    %c0_i32 = arith.constant 0 : i32
    %c0_i32_0 = arith.constant 0 : i32
    return %arg0, %c0_i32 : i32, i32
  }
  func.func @transform_1(%arg0: i32) -> (i32, i32) {
    %c0_i32 = arith.constant 0 : i32
    %c0_i32_0 = arith.constant 0 : i32
    return %arg0, %c0_i32 : i32, i32
  }
  func.func @transform_2(%arg0: i32) -> (i32, i32) {
    %c0_i32 = arith.constant 0 : i32
    %c0_i32_0 = arith.constant 0 : i32
    %c0_i32_1 = arith.constant 0 : i32
    return %c0_i32, %c0_i32_0 : i32, i32
  }
  func.func @transform_3(%arg0: i32) -> (i32, i32) {
    %c0_i32 = arith.constant 0 : i32
    %c0_i32_0 = arith.constant 0 : i32
    %c0_i32_1 = arith.constant 0 : i32
    return %c0_i32, %c0_i32_0 : i32, i32
  }
  func.func @transform_4(%arg0: i32) -> (i32, i32) {
    %c0_i32 = arith.constant 0 : i32
    %c0_i32_0 = arith.constant 0 : i32
    %c0_i32_1 = arith.constant 0 : i32
    return %c0_i32, %c0_i32_0 : i32, i32
  }
  func.func @transform_5(%arg0: i32) -> (i32, i32) {
    %c0_i32 = arith.constant 0 : i32
    %c0_i32_0 = arith.constant 0 : i32
    %c0_i32_1 = arith.constant 0 : i32
    return %c0_i32, %c0_i32_0 : i32, i32
  }
  func.func @transform_6(%arg0: i32) -> (i32, i32) {
    %c0_i32 = arith.constant 0 : i32
    %c0_i32_0 = arith.constant 0 : i32
    %c0_i32_1 = arith.constant 0 : i32
    return %c0_i32, %c0_i32_0 : i32, i32
  }
  func.func @transform_7(%arg0: i32) -> (i32, i32) {
    %c0_i32 = arith.constant 0 : i32
    %c0_i32_0 = arith.constant 0 : i32
    %c0_i32_1 = arith.constant 0 : i32
    return %c0_i32, %c0_i32_0 : i32, i32
  }
  func.func @transform_8(%arg0: i32) -> (i32, i32) {
    %c0_i32 = arith.constant 0 : i32
    %c0_i32_0 = arith.constant 0 : i32
    %c0_i32_1 = arith.constant 0 : i32
    return %c0_i32, %c0_i32_0 : i32, i32
  }
  func.func @transform_9(%arg0: i32) -> (i32, i32) {
    %c0_i32 = arith.constant 0 : i32
    %c0_i32_0 = arith.constant 0 : i32
    return %c0_i32, %arg0 : i32, i32
  }
}

</mosaic_0001>

<llo_original>
// kernel: tpu_custom_call.1
$region0: #{tpu_custom_call.1}
  #allocation0 [shape = 'u32[]', space=smem, size = 0x4, offset = 0x4, fixed_abs, tag = 'smem constant byte address 0x4 - core index']
  #allocation1 [shape = 'u32[144,128]{1,0:T(1,128)}', space=vmem, size = 0x12000, scoped, tag = 'internal scratch']
  #allocation2 [shape = 'f32[1,1]{1,0:T(1,128)S(6)}', space=smem, size = 0x200, scoped, tag = 'scoped memory for tpu_custom_call.1']
  %s0 = inlined_call_operand.vmem [shape: f32[16,16], index: 0, kind: input, shape index: {}]
  %s1 = inlined_call_operand.vmem [shape: f32[16,4], index: 1, kind: input, shape index: {}]
  %s2 = inlined_call_operand.hbm [shape: bf16[16,512], index: 2, kind: input, shape index: {}]
  %s3 = inlined_call_operand.vmem [shape: bf16[4,512], index: 3, kind: input, shape index: {}]
  %s4 = inlined_call_operand.vmem [shape: f32[1,512], index: 4, kind: input, shape index: {}]
  %s5 = inlined_call_operand.hbm [shape: bf16[512,384], index: 5, kind: input, shape index: {}]
  %s6 = inlined_call_operand.vmem [shape: f32[1,384], index: 6, kind: input, shape index: {}]
  %s7 = inlined_call_operand.vmem [shape: f32[1,384], index: 7, kind: input, shape index: {}]
  %s8 = inlined_call_operand.<no memory space> [shape: f32[1,1], index: 8, kind: input, shape index: {}]
  %s9 = inlined_call_operand.hbm [shape: f32[1,16], index: 9, kind: output, shape index: {}]
  %s10 = sld [smem:[#allocation0]]
  $region54: #{tpu_custom_call.1} parent=0
    _
  %s12 = ssub.s32 1, %s10
  %s13 = scalar_select 0, %s12, %s10
  %14 = sst [smem:[#allocation2]] %s8
  $region1: #{tpu_custom_call.1} parent=0
    #allocation3 [shape = 'u8[16384]{0}', space=vmem, size = 0x4000, scoped, tag = 'input window, operand 2, single buffered']
    #allocation4 [shape = 's32[1]{0}', space=sflag, size = 0x4, scoped, tag = 'scoped memory for tpu_custom_call.1']
    #allocation5 [shape = 's32[1]{0}', space=sflag, size = 0x4, scoped, tag = 'scoped memory for tpu_custom_call.1']
    #allocation6 [shape = 'u8[393216]{0}', space=vmem, size = 0x60000, scoped, tag = 'input window, operand 5, single buffered']
    #allocation7 [shape = 's32[1]{0}', space=sflag, size = 0x4, scoped, tag = 'scoped memory for tpu_custom_call.1']
    #allocation8 [shape = 'u8[512]{0}', space=vmem, size = 0x400, scoped, tag = 'output window, operand 0, single buffered']
    %15 = vsyncpa [#allocation4], 0
    %16 = vsyncpa [#allocation7], 0
    %17 = vsyncpa [#allocation5], 0
    // Predicated region
    $region2: #{tpu_custom_call.1} parent=1 // pred_check
      _
    $region3: #{tpu_custom_call.1} parent=1 // pred_check_branch
      %19 = sbr.rel (0) target = $region5
    $region4: #{tpu_custom_call.1} parent=1 // pred_region
      _
    $region5: #{tpu_custom_call.1} parent=1 // pred_fallthru
      _
    // Predicated region
    $region6: #{tpu_custom_call.1} parent=1 // pred_check
      _
    $region7: #{tpu_custom_call.1} parent=1 // pred_check_branch
      %21 = sbr.rel (0) target = $region9
    $region8: #{tpu_custom_call.1} parent=1 // pred_region
      _
    $region9: #{tpu_custom_call.1} parent=1 // pred_fallthru
      _
    // Predicated region
    $region10: #{tpu_custom_call.1} parent=1 // pred_check
      _
    $region11: #{tpu_custom_call.1} parent=1 // pred_check_branch
      %23 = sbr.rel (0) target = $region13
    $region12: #{tpu_custom_call.1} parent=1 // pred_region
      %s25 = ssub.s32 512, 512
      %26 = vsyncadd [#allocation4], %s25
      %s27 = sshll.u32 [#allocation3], 4
      %s28 = int_to_ptr.vmem [resolvable:$true] %s27
      %33 = dma.hbm_to_vmem [thread:$0]  %s2, 512, %s28, [#allocation4], 256, 256, 16
    $region13: #{tpu_custom_call.1} parent=1 // pred_fallthru
      _
    // Predicated region
    $region14: #{tpu_custom_call.1} parent=1 // pred_check
      _
    $region15: #{tpu_custom_call.1} parent=1 // pred_check_branch
      %35 = sbr.rel (0) target = $region17
    $region16: #{tpu_custom_call.1} parent=1 // pred_region
      _
    $region17: #{tpu_custom_call.1} parent=1 // pred_fallthru
      _
    // Predicated region
    $region18: #{tpu_custom_call.1} parent=1 // pred_check
      _
    $region19: #{tpu_custom_call.1} parent=1 // pred_check_branch
      %37 = sbr.rel (0) target = $region21
    $region20: #{tpu_custom_call.1} parent=1 // pred_region
      _
    $region21: #{tpu_custom_call.1} parent=1 // pred_fallthru
      _
    // Predicated region
    $region22: #{tpu_custom_call.1} parent=1 // pred_check
      _
    $region23: #{tpu_custom_call.1} parent=1 // pred_check_branch
      %39 = sbr.rel (0) target = $region25
    $region24: #{tpu_custom_call.1} parent=1 // pred_region
      %s41 = ssub.s32 12288, 12288
      %42 = vsyncadd [#allocation7], %s41
      %s43 = sshll.u32 [#allocation6], 4
      %s44 = int_to_ptr.vmem [resolvable:$true] %s43
      %49 = dma.hbm_to_vmem [thread:$0]  %s5, 12288, %s44, [#allocation7], 192, 192, 12
    $region25: #{tpu_custom_call.1} parent=1 // pred_fallthru
      _
    // Predicated region
    $region26: #{tpu_custom_call.1} parent=1 // pred_check
      _
    $region27: #{tpu_custom_call.1} parent=1 // pred_check_branch
      %51 = sbr.rel (0) target = $region29
    $region28: #{tpu_custom_call.1} parent=1 // pred_region
      _
    $region29: #{tpu_custom_call.1} parent=1 // pred_fallthru
      _
    // Predicated region
    $region30: #{tpu_custom_call.1} parent=1 // pred_check
      _
    $region31: #{tpu_custom_call.1} parent=1 // pred_check_branch
      %53 = sbr.rel (0) target = $region33
    $region32: #{tpu_custom_call.1} parent=1 // pred_region
      _
    $region33: #{tpu_custom_call.1} parent=1 // pred_fallthru
      _
    // Predicated region
    $region34: #{tpu_custom_call.1} parent=1 // pred_check
      _
    $region35: #{tpu_custom_call.1} parent=1 // pred_check_branch
      %55 = sbr.rel (0) target = $region37
    $region36: #{tpu_custom_call.1} parent=1 // pred_region
      _
    $region37: #{tpu_custom_call.1} parent=1 // pred_fallthru
      _
    // Predicated region
    $region38: #{tpu_custom_call.1} parent=1 // pred_check
      _
    $region39: #{tpu_custom_call.1} parent=1 // pred_check_branch
      %57 = sbr.rel (0) target = $region41
    $region40: #{tpu_custom_call.1} parent=1 // pred_region
      %58 = dma.done [#allocation4], 512
    $region41: #{tpu_custom_call.1} parent=1 // pred_fallthru
      _
    // Predicated region
    $region42: #{tpu_custom_call.1} parent=1 // pred_check
      _
    $region43: #{tpu_custom_call.1} parent=1 // pred_check_branch
      %60 = sbr.rel (0) target = $region45
    $region44: #{tpu_custom_call.1} parent=1 // pred_region
      %61 = dma.done [#allocation7], 12288
    $region45: #{tpu_custom_call.1} parent=1 // pred_fallthru
      _
    %v63 = vld [vmem:[%s0] sm:$0xff]
    %v64 = vld [vmem:[%s0 + $0x8] sm:$0xff]
    %v65 = vpack.c.bf16 %v64, %v63
    %v66 = vld [vmem:[%s1] sm:$0xff]
    %v67 = vld [vmem:[%s1 + $0x8] sm:$0xff]
    %v68 = vpack.c.bf16 %v67, %v66
    %v69 = vld [vmem:[#allocation3] sm:$0xff]
    %v70 = vld [vmem:[#allocation3 + $0x8] sm:$0xff]
    %v71 = vld [vmem:[#allocation3 + $0x10] sm:$0xff]
    %v72 = vld [vmem:[#allocation3 + $0x18] sm:$0xff]
    %v73 = vld [vmem:[%s3] sm:$0xff]
    %v75 = vcombine.high %v73, %v73
    %v77 = vunpack.c.l.s4 1983009808
    %v78 = vunpack.c.0.s8 %v77
    %v79 = vlaneseq
    %v80 = vshrl.u32 %v79, 7
    %v81 = vsub.s32 %v78, %v80
    %v82 = vrot.slane %v73, %v81
    %v84 = vunpack.c.l.s4 1983009808
    %v85 = vunpack.c.0.s8 %v84
    %v86 = vlaneseq
    %v87 = vshrl.u32 %v86, 7
    %v88 = vsub.s32 %v85, %v87
    %v89 = vrot.slane %v75, %v88
    %v90 = vcombine.high %v82, %v82
    %v91 = vcombine.high %v89, %v89
    %vm92 = vcmask 31744
    %v94 = vsel %vm92, %v68, 0
    %vm96 = vcmask 1041408
    %v98 = vsel %vm96, %v82, 0
    %v101 = vsel %vm96, %v90, 0
    %v104 = vsel %vm96, %v89, 0
    %v107 = vsel %vm96, %v91, 0
    %109 = vmatprep.subr.bf16.mxu0 %v101
    %110 = vmatpush1.bf16.msra.mxu0 %v98
    %111 = vmatprep.subr.bf16.mxu0 0
    %112 = vmatpush1.bf16.msra.mxu0 0
    %113 = vmatprep.subr.bf16.mxu0 0
    %114 = vmatpush1.bf16.msra.mxu0 0
    %115 = vmatprep.subr.bf16.mxu0 0
    %116 = vmatpush1.bf16.msra.mxu0 0
    %117 = vmatprep.subr.bf16.mxu0 0
    %118 = vmatpush1.bf16.msra.mxu0 0
    %119 = vmatprep.subr.bf16.mxu0 0
    %120 = vmatpush1.bf16.msra.mxu0 0
    %121 = vmatprep.subr.bf16.mxu0 0
    %122 = vmatpush1.bf16.msra.mxu0 0
    %123 = vmatprep.subr.bf16.mxu0 0
    %124 = vmatpush1.bf16.msra.mxu0 0
    %125 = vmatprep.subr.bf16.mxu0 0
    %126 = vmatpush1.bf16.msra.mxu0 0
    %127 = vmatprep.subr.bf16.mxu0 0
    %128 = vmatpush1.bf16.msra.mxu0 0
    %129 = vmatprep.subr.bf16.mxu0 0
    %130 = vmatpush1.bf16.msra.mxu0 0
    %131 = vmatprep.subr.bf16.mxu0 0
    %132 = vmatpush1.bf16.msra.mxu0 0
    %133 = vmatprep.subr.bf16.mxu0 0
    %134 = vmatpush1.bf16.msra.mxu0 0
    %135 = vmatprep.subr.bf16.mxu0 0
    %136 = vmatpush1.bf16.msra.mxu0 0
    %137 = vmatprep.subr.bf16.mxu0 0
    %138 = vmatpush1.bf16.msra.mxu0 0
    %139 = vmatprep.subr.bf16.mxu0 0
    %140 = vmatpush1.bf16.msra.mxu0 0
    %141 = vmatprep.mubr.bf16.mxu0 0
    %142 = vmatmul.mubr.bf16.gmra.mrb[0].mxu0 %v94
    %v143 = vpop.f32.mrb[0].mxu0
    %v144 = vadd.f32 0.0, %v143
    %v145 = vpop.f32.mrb[0].mxu0
    %v146 = vadd.f32 0.0, %v145
    %v147 = vpop.f32.mrb[0].mxu0
    %v148 = vadd.f32 0.0, %v147
    %v149 = vpop.f32.mrb[0].mxu0
    %v150 = vadd.f32 0.0, %v149
    %151 = vdwg.mxu0
    %152 = vmatprep.subr.bf16.mxu0 %v107
    %153 = vmatpush1.bf16.msra.mxu0 %v104
    %154 = vmatprep.subr.bf16.mxu0 0
    %155 = vmatpush1.bf16.msra.mxu0 0
    %156 = vmatprep.subr.bf16.mxu0 0
    %157 = vmatpush1.bf16.msra.mxu0 0
    %158 = vmatprep.subr.bf16.mxu0 0
    %159 = vmatpush1.bf16.msra.mxu0 0
    %160 = vmatprep.subr.bf16.mxu0 0
    %161 = vmatpush1.bf16.msra.mxu0 0
    %162 = vmatprep.subr.bf16.mxu0 0
    %163 = vmatpush1.bf16.msra.mxu0 0
    %164 = vmatprep.subr.bf16.mxu0 0
    %165 = vmatpush1.bf16.msra.mxu0 0
    %166 = vmatprep.subr.bf16.mxu0 0
    %167 = vmatpush1.bf16.msra.mxu0 0
    %168 = vmatprep.subr.bf16.mxu0 0
    %169 = vmatpush1.bf16.msra.mxu0 0
    %170 = vmatprep.subr.bf16.mxu0 0
    %171 = vmatpush1.bf16.msra.mxu0 0
    %172 = vmatprep.subr.bf16.mxu0 0
    %173 = vmatpush1.bf16.msra.mxu0 0
    %174 = vmatprep.subr.bf16.mxu0 0
    %175 = vmatpush1.bf16.msra.mxu0 0
    %176 = vmatprep.subr.bf16.mxu0 0
    %177 = vmatpush1.bf16.msra.mxu0 0
    %178 = vmatprep.subr.bf16.mxu0 0
    %179 = vmatpush1.bf16.msra.mxu0 0
    %180 = vmatprep.subr.bf16.mxu0 0
    %181 = vmatpush1.bf16.msra.mxu0 0
    %182 = vmatprep.subr.bf16.mxu0 0
    %183 = vmatpush1.bf16.msra.mxu0 0
    %184 = vmatprep.mubr.bf16.mxu0 0
    %185 = vmatmul.mubr.bf16.gmra.mrb[0].mxu0 %v94
    %v186 = vpop.f32.mrb[0].mxu0
    %v187 = vadd.f32 0.0, %v186
    %v188 = vpop.f32.mrb[0].mxu0
    %v189 = vadd.f32 0.0, %v188
    %v190 = vpop.f32.mrb[0].mxu0
    %v191 = vadd.f32 0.0, %v190
    %v192 = vpop.f32.mrb[0].mxu0
    %v193 = vadd.f32 0.0, %v192
    %194 = vdwg.mxu0
    %v199 = vunpack.c.l.b16 %v69
    %v200 = vunpack.c.h.b16 %v69
    %v201 = vunpack.c.l.b16 %v70
    %v202 = vunpack.c.h.b16 %v70
    %v203 = vunpack.c.l.b16 %v71
    %v204 = vunpack.c.h.b16 %v71
    %v205 = vunpack.c.l.b16 %v72
    %v206 = vunpack.c.h.b16 %v72
    %v207 = vpack.c.b16 %v203, %v199
    %v208 = vpack.c.b16 %v204, %v200
    %v209 = vpack.c.b16 %v205, %v201
    %v210 = vpack.c.b16 %v206, %v202
    %vm215 = vcmask 130048
    %v217 = vsel %vm215, %v65, 0
    %219 = vmatprep.subr.bf16.mxu0 %v208
    %220 = vmatpush1.bf16.msra.mxu0 %v207
    %221 = vmatprep.subr.bf16.mxu0 0
    %222 = vmatpush1.bf16.msra.mxu0 0
    %223 = vmatprep.subr.bf16.mxu0 0
    %224 = vmatpush1.bf16.msra.mxu0 0
    %225 = vmatprep.subr.bf16.mxu0 0
    %226 = vmatpush1.bf16.msra.mxu0 0
    %227 = vmatprep.subr.bf16.mxu0 0
    %228 = vmatpush1.bf16.msra.mxu0 0
    %229 = vmatprep.subr.bf16.mxu0 0
    %230 = vmatpush1.bf16.msra.mxu0 0
    %231 = vmatprep.subr.bf16.mxu0 0
    %232 = vmatpush1.bf16.msra.mxu0 0
    %233 = vmatprep.subr.bf16.mxu0 0
    %234 = vmatpush1.bf16.msra.mxu0 0
    %235 = vmatprep.subr.bf16.mxu0 0
    %236 = vmatpush1.bf16.msra.mxu0 0
    %237 = vmatprep.subr.bf16.mxu0 0
    %238 = vmatpush1.bf16.msra.mxu0 0
    %239 = vmatprep.subr.bf16.mxu0 0
    %240 = vmatpush1.bf16.msra.mxu0 0
    %241 = vmatprep.subr.bf16.mxu0 0
    %242 = vmatpush1.bf16.msra.mxu0 0
    %243 = vmatprep.subr.bf16.mxu0 0
    %244 = vmatpush1.bf16.msra.mxu0 0
    %245 = vmatprep.subr.bf16.mxu0 0
    %246 = vmatpush1.bf16.msra.mxu0 0
    %247 = vmatprep.subr.bf16.mxu0 0
    %248 = vmatpush1.bf16.msra.mxu0 0
    %249 = vmatprep.subr.bf16.mxu0 0
    %250 = vmatpush1.bf16.msra.mxu0 0
    %251 = vmatprep.mubr.bf16.mxu0 0
    %252 = vmatmul.mubr.bf16.gmra.mrb[0].mxu0 %v217
    %v253 = vpop.f32.mrb[0].mxu0
    %v254 = vadd.f32 %v144, %v253
    %v255 = vpop.f32.mrb[0].mxu0
    %v256 = vadd.f32 %v146, %v255
    %v257 = vpop.f32.mrb[0].mxu0
    %v258 = vadd.f32 %v148, %v257
    %v259 = vpop.f32.mrb[0].mxu0
    %v260 = vadd.f32 %v150, %v259
    %261 = vdwg.mxu0
    %262 = vmatprep.subr.bf16.mxu0 %v210
    %263 = vmatpush1.bf16.msra.mxu0 %v209
    %264 = vmatprep.subr.bf16.mxu0 0
    %265 = vmatpush1.bf16.msra.mxu0 0
    %266 = vmatprep.subr.bf16.mxu0 0
    %267 = vmatpush1.bf16.msra.mxu0 0
    %268 = vmatprep.subr.bf16.mxu0 0
    %269 = vmatpush1.bf16.msra.mxu0 0
    %270 = vmatprep.subr.bf16.mxu0 0
    %271 = vmatpush1.bf16.msra.mxu0 0
    %272 = vmatprep.subr.bf16.mxu0 0
    %273 = vmatpush1.bf16.msra.mxu0 0
    %274 = vmatprep.subr.bf16.mxu0 0
    %275 = vmatpush1.bf16.msra.mxu0 0
    %276 = vmatprep.subr.bf16.mxu0 0
    %277 = vmatpush1.bf16.msra.mxu0 0
    %278 = vmatprep.subr.bf16.mxu0 0
    %279 = vmatpush1.bf16.msra.mxu0 0
    %280 = vmatprep.subr.bf16.mxu0 0
    %281 = vmatpush1.bf16.msra.mxu0 0
    %282 = vmatprep.subr.bf16.mxu0 0
    %283 = vmatpush1.bf16.msra.mxu0 0
    %284 = vmatprep.subr.bf16.mxu0 0
    %285 = vmatpush1.bf16.msra.mxu0 0
    %286 = vmatprep.subr.bf16.mxu0 0
    %287 = vmatpush1.bf16.msra.mxu0 0
    %288 = vmatprep.subr.bf16.mxu0 0
    %289 = vmatpush1.bf16.msra.mxu0 0
    %290 = vmatprep.subr.bf16.mxu0 0
    %291 = vmatpush1.bf16.msra.mxu0 0
    %292 = vmatprep.subr.bf16.mxu0 0
    %293 = vmatpush1.bf16.msra.mxu0 0
    %294 = vmatprep.mubr.bf16.mxu0 0
    %295 = vmatmul.mubr.bf16.gmra.mrb[0].mxu0 %v217
    %v296 = vpop.f32.mrb[0].mxu0
    %v297 = vadd.f32 %v187, %v296
    %v298 = vpop.f32.mrb[0].mxu0
    %v299 = vadd.f32 %v189, %v298
    %v300 = vpop.f32.mrb[0].mxu0
    %v301 = vadd.f32 %v191, %v300
    %v302 = vpop.f32.mrb[0].mxu0
    %v303 = vadd.f32 %v193, %v302
    %304 = vdwg.mxu0
    %v305 = vld [vmem:[%s4] sm:$0xf]
    %v307 = vlaneseq
    %v308 = vshrl.u32 %v307, 7
    %v309 = vsub.s32 0, %v308
    %v310 = vrot.slane %v305, %v309
    %v311 = vlaneseq
    %v312 = vshrl.u32 %v311, 7
    %v313 = vsub.s32 1, %v312
    %v314 = vrot.slane %v305, %v313
    %v315 = vlaneseq
    %v316 = vshrl.u32 %v315, 7
    %v317 = vsub.s32 2, %v316
    %v318 = vrot.slane %v305, %v317
    %v319 = vlaneseq
    %v320 = vshrl.u32 %v319, 7
    %v321 = vsub.s32 3, %v320
    %v322 = vrot.slane %v305, %v321
    %v327 = vadd.f32 %v254, %v310
    %v328 = vadd.f32 %v256, %v314
    %v329 = vadd.f32 %v297, %v318
    %v330 = vadd.f32 %v299, %v322
    %v331 = vadd.f32 %v258, %v310
    %v332 = vadd.f32 %v260, %v314
    %v333 = vadd.f32 %v301, %v318
    %v334 = vadd.f32 %v303, %v322
    %v335 = vmax.f32 %v327, 0.0
    %v336 = vmax.f32 %v328, 0.0
    %v337 = vmax.f32 %v329, 0.0
    %v338 = vmax.f32 %v330, 0.0
    %v339 = vmax.f32 %v331, 0.0
    %v340 = vmax.f32 %v332, 0.0
    %v341 = vmax.f32 %v333, 0.0
    %v342 = vmax.f32 %v334, 0.0
    %v343 = vpack.c.bf16 %v339, %v335
    %v344 = vpack.c.bf16 %v340, %v336
    %v345 = vpack.c.bf16 %v341, %v337
    %v346 = vpack.c.bf16 %v342, %v338
    %v347 = vld [vmem:[#allocation6] sm:$0xff]
    %v348 = vld [vmem:[#allocation6 + $0x8] sm:$0xf]
    %v349 = vld [vmem:[#allocation6 + $0xc] sm:$0xff]
    %v350 = vld [vmem:[#allocation6 + $0x14] sm:$0xf]
    %v351 = vld [vmem:[#allocation6 + $0x18] sm:$0xff]
    %v352 = vld [vmem:[#allocation6 + $0x20] sm:$0xf]
    %v353 = vld [vmem:[#allocation6 + $0x24] sm:$0xff]
    %v354 = vld [vmem:[#allocation6 + $0x2c] sm:$0xf]
    %v355 = vld [vmem:[#allocation6 + $0x30] sm:$0xff]
    %v356 = vld [vmem:[#allocation6 + $0x38] sm:$0xf]
    %v357 = vld [vmem:[#allocation6 + $0x3c] sm:$0xff]
    %v358 = vld [vmem:[#allocation6 + $0x44] sm:$0xf]
    %v359 = vld [vmem:[#allocation6 + $0x48] sm:$0xff]
    %v360 = vld [vmem:[#allocation6 + $0x50] sm:$0xf]
    %v361 = vld [vmem:[#allocation6 + $0x54] sm:$0xff]
    %v362 = vld [vmem:[#allocation6 + $0x5c] sm:$0xf]
    %v363 = vld [vmem:[#allocation6 + $0x60] sm:$0xff]
    %v364 = vld [vmem:[#allocation6 + $0x68] sm:$0xf]
    %v365 = vld [vmem:[#allocation6 + $0x6c] sm:$0xff]
    %v366 = vld [vmem:[#allocation6 + $0x74] sm:$0xf]
    %v367 = vld [vmem:[#allocation6 + $0x78] sm:$0xff]
    %v368 = vld [vmem:[#allocation6 + $0x80] sm:$0xf]
    %v369 = vld [vmem:[#allocation6 + $0x84] sm:$0xff]
    %v370 = vld [vmem:[#allocation6 + $0x8c] sm:$0xf]
    %v371 = vld [vmem:[#allocation6 + $0x90] sm:$0xff]
    %v372 = vld [vmem:[#allocation6 + $0x98] sm:$0xf]
    %v373 = vld [vmem:[#allocation6 + $0x9c] sm:$0xff]
    %v374 = vld [vmem:[#allocation6 + $0xa4] sm:$0xf]
    %v375 = vld [vmem:[#allocation6 + $0xa8] sm:$0xff]
    %v376 = vld [vmem:[#allocation6 + $0xb0] sm:$0xf]
    %v377 = vld [vmem:[#allocation6 + $0xb4] sm:$0xff]
    %v378 = vld [vmem:[#allocation6 + $0xbc] sm:$0xf]
    %v379 = vld [vmem:[#allocation6 + $0xc0] sm:$0xff]
    %v380 = vld [vmem:[#allocation6 + $0xc8] sm:$0xf]
    %v381 = vld [vmem:[#allocation6 + $0xcc] sm:$0xff]
    %v382 = vld [vmem:[#allocation6 + $0xd4] sm:$0xf]
    %v383 = vld [vmem:[#allocation6 + $0xd8] sm:$0xff]
    %v384 = vld [vmem:[#allocation6 + $0xe0] sm:$0xf]
    %v385 = vld [vmem:[#allocation6 + $0xe4] sm:$0xff]
    %v386 = vld [vmem:[#allocation6 + $0xec] sm:$0xf]
    %v387 = vld [vmem:[#allocation6 + $0xf0] sm:$0xff]
    %v388 = vld [vmem:[#allocation6 + $0xf8] sm:$0xf]
    %v389 = vld [vmem:[#allocation6 + $0xfc] sm:$0xff]
    %v390 = vld [vmem:[#allocation6 + $0x104] sm:$0xf]
    %v391 = vld [vmem:[#allocation6 + $0x108] sm:$0xff]
    %v392 = vld [vmem:[#allocation6 + $0x110] sm:$0xf]
    %v393 = vld [vmem:[#allocation6 + $0x114] sm:$0xff]
    %v394 = vld [vmem:[#allocation6 + $0x11c] sm:$0xf]
    %v395 = vld [vmem:[#allocation6 + $0x120] sm:$0xff]
    %v396 = vld [vmem:[#allocation6 + $0x128] sm:$0xf]
    %v397 = vld [vmem:[#allocation6 + $0x12c] sm:$0xff]
    %v398 = vld [vmem:[#allocation6 + $0x134] sm:$0xf]
    %v399 = vld [vmem:[#allocation6 + $0x138] sm:$0xff]
    %v400 = vld [vmem:[#allocation6 + $0x140] sm:$0xf]
    %v401 = vld [vmem:[#allocation6 + $0x144] sm:$0xff]
    %v402 = vld [vmem:[#allocation6 + $0x14c] sm:$0xf]
    %v403 = vld [vmem:[#allocation6 + $0x150] sm:$0xff]
    %v404 = vld [vmem:[#allocation6 + $0x158] sm:$0xf]
    %v405 = vld [vmem:[#allocation6 + $0x15c] sm:$0xff]
    %v406 = vld [vmem:[#allocation6 + $0x164] sm:$0xf]
    %v407 = vld [vmem:[#allocation6 + $0x168] sm:$0xff]
    %v408 = vld [vmem:[#allocation6 + $0x170] sm:$0xf]
    %v409 = vld [vmem:[#allocation6 + $0x174] sm:$0xff]
    %v410 = vld [vmem:[#allocation6 + $0x17c] sm:$0xf]
    %v411 = vld [vmem:[#allocation6 + $0x180] sm:$0xff]
    %v412 = vld [vmem:[#allocation6 + $0x188] sm:$0xf]
    %v413 = vld [vmem:[#allocation6 + $0x18c] sm:$0xff]
    %v414 = vld [vmem:[#allocation6 + $0x194] sm:$0xf]
    %v415 = vld [vmem:[#allocation6 + $0x198] sm:$0xff]
    %v416 = vld [vmem:[#allocation6 + $0x1a0] sm:$0xf]
    %v417 = vld [vmem:[#allocation6 + $0x1a4] sm:$0xff]
    %v418 = vld [vmem:[#allocation6 + $0x1ac] sm:$0xf]
    %v419 = vld [vmem:[#allocation6 + $0x1b0] sm:$0xff]
    %v420 = vld [vmem:[#allocation6 + $0x1b8] sm:$0xf]
    %v421 = vld [vmem:[#allocation6 + $0x1bc] sm:$0xff]
    %v422 = vld [vmem:[#allocation6 + $0x1c4] sm:$0xf]
    %v423 = vld [vmem:[#allocation6 + $0x1c8] sm:$0xff]
    %v424 = vld [vmem:[#allocation6 + $0x1d0] sm:$0xf]
    %v425 = vld [vmem:[#allocation6 + $0x1d4] sm:$0xff]
    %v426 = vld [vmem:[#allocation6 + $0x1dc] sm:$0xf]
    %v427 = vld [vmem:[#allocation6 + $0x1e0] sm:$0xff]
    %v428 = vld [vmem:[#allocation6 + $0x1e8] sm:$0xf]
    %v429 = vld [vmem:[#allocation6 + $0x1ec] sm:$0xff]
    %v430 = vld [vmem:[#allocation6 + $0x1f4] sm:$0xf]
    %v431 = vld [vmem:[#allocation6 + $0x1f8] sm:$0xff]
    %v432 = vld [vmem:[#allocation6 + $0x200] sm:$0xf]
    %v433 = vld [vmem:[#allocation6 + $0x204] sm:$0xff]
    %v434 = vld [vmem:[#allocation6 + $0x20c] sm:$0xf]
    %v435 = vld [vmem:[#allocation6 + $0x210] sm:$0xff]
    %v436 = vld [vmem:[#allocation6 + $0x218] sm:$0xf]
    %v437 = vld [vmem:[#allocation6 + $0x21c] sm:$0xff]
    %v438 = vld [vmem:[#allocation6 + $0x224] sm:$0xf]
    %v439 = vld [vmem:[#allocation6 + $0x228] sm:$0xff]
    %v440 = vld [vmem:[#allocation6 + $0x230] sm:$0xf]
    %v441 = vld [vmem:[#allocation6 + $0x234] sm:$0xff]
    %v442 = vld [vmem:[#allocation6 + $0x23c] sm:$0xf]
    %v443 = vld [vmem:[#allocation6 + $0x240] sm:$0xff]
    %v444 = vld [vmem:[#allocation6 + $0x248] sm:$0xf]
    %v445 = vld [vmem:[#allocation6 + $0x24c] sm:$0xff]
    %v446 = vld [vmem:[#allocation6 + $0x254] sm:$0xf]
    %v447 = vld [vmem:[#allocation6 + $0x258] sm:$0xff]
    %v448 = vld [vmem:[#allocation6 + $0x260] sm:$0xf]
    %v449 = vld [vmem:[#allocation6 + $0x264] sm:$0xff]
    %v450 = vld [vmem:[#allocation6 + $0x26c] sm:$0xf]
    %v451 = vld [vmem:[#allocation6 + $0x270] sm:$0xff]
    %v452 = vld [vmem:[#allocation6 + $0x278] sm:$0xf]
    %v453 = vld [vmem:[#allocation6 + $0x27c] sm:$0xff]
    %v454 = vld [vmem:[#allocation6 + $0x284] sm:$0xf]
    %v455 = vld [vmem:[#allocation6 + $0x288] sm:$0xff]
    %v456 = vld [vmem:[#allocation6 + $0x290] sm:$0xf]
    %v457 = vld [vmem:[#allocation6 + $0x294] sm:$0xff]
    %v458 = vld [vmem:[#allocation6 + $0x29c] sm:$0xf]
    %v459 = vld [vmem:[#allocation6 + $0x2a0] sm:$0xff]
    %v460 = vld [vmem:[#allocation6 + $0x2a8] sm:$0xf]
    %v461 = vld [vmem:[#allocation6 + $0x2ac] sm:$0xff]
    %v462 = vld [vmem:[#allocation6 + $0x2b4] sm:$0xf]
    %v463 = vld [vmem:[#allocation6 + $0x2b8] sm:$0xff]
    %v464 = vld [vmem:[#allocation6 + $0x2c0] sm:$0xf]
    %v465 = vld [vmem:[#allocation6 + $0x2c4] sm:$0xff]
    %v466 = vld [vmem:[#allocation6 + $0x2cc] sm:$0xf]
    %v467 = vld [vmem:[#allocation6 + $0x2d0] sm:$0xff]
    %v468 = vld [vmem:[#allocation6 + $0x2d8] sm:$0xf]
    %v469 = vld [vmem:[#allocation6 + $0x2dc] sm:$0xff]
    %v470 = vld [vmem:[#allocation6 + $0x2e4] sm:$0xf]
    %v471 = vld [vmem:[#allocation6 + $0x2e8] sm:$0xff]
    %v472 = vld [vmem:[#allocation6 + $0x2f0] sm:$0xf]
    %v473 = vld [vmem:[#allocation6 + $0x2f4] sm:$0xff]
    %v474 = vld [vmem:[#allocation6 + $0x2fc] sm:$0xf]
    %v475 = vld [vmem:[%s6] sm:$0x7]
    %v477 = vlaneseq
    %v478 = vshrl.u32 %v477, 7
    %v479 = vsub.s32 0, %v478
    %v480 = vrot.slane %v475, %v479
    %v481 = vlaneseq
    %v482 = vshrl.u32 %v481, 7
    %v483 = vsub.s32 1, %v482
    %v484 = vrot.slane %v475, %v483
    %v485 = vlaneseq
    %v486 = vshrl.u32 %v485, 7
    %v487 = vsub.s32 2, %v486
    %v488 = vrot.slane %v475, %v487
    %v620 = vunpack.c.l.b16 %v347
    %v621 = vunpack.c.h.b16 %v347
    %v622 = vunpack.c.l.b16 %v348
    %v623 = vunpack.c.l.b16 %v349
    %v624 = vunpack.c.h.b16 %v349
    %v625 = vunpack.c.l.b16 %v350
    %v626 = vunpack.c.l.b16 %v351
    %v627 = vunpack.c.h.b16 %v351
    %v628 = vunpack.c.l.b16 %v352
    %v629 = vunpack.c.l.b16 %v353
    %v630 = vunpack.c.h.b16 %v353
    %v631 = vunpack.c.l.b16 %v354
    %v632 = vunpack.c.l.b16 %v355
    %v633 = vunpack.c.h.b16 %v355
    %v634 = vunpack.c.l.b16 %v356
    %v635 = vunpack.c.l.b16 %v357
    %v636 = vunpack.c.h.b16 %v357
    %v637 = vunpack.c.l.b16 %v358
    %v638 = vunpack.c.l.b16 %v359
    %v639 = vunpack.c.h.b16 %v359
    %v640 = vunpack.c.l.b16 %v360
    %v641 = vunpack.c.l.b16 %v361
    %v642 = vunpack.c.h.b16 %v361
    %v643 = vunpack.c.l.b16 %v362
    %v644 = vunpack.c.l.b16 %v363
    %v645 = vunpack.c.h.b16 %v363
    %v646 = vunpack.c.l.b16 %v364
    %v647 = vunpack.c.l.b16 %v365
    %v648 = vunpack.c.h.b16 %v365
    %v649 = vunpack.c.l.b16 %v366
    %v650 = vunpack.c.l.b16 %v367
    %v651 = vunpack.c.h.b16 %v367
    %v652 = vunpack.c.l.b16 %v368
    %v653 = vunpack.c.l.b16 %v369
    %v654 = vunpack.c.h.b16 %v369
    %v655 = vunpack.c.l.b16 %v370
    %v656 = vunpack.c.l.b16 %v371
    %v657 = vunpack.c.h.b16 %v371
    %v658 = vunpack.c.l.b16 %v372
    %v659 = vunpack.c.l.b16 %v373
    %v660 = vunpack.c.h.b16 %v373
    %v661 = vunpack.c.l.b16 %v374
    %v662 = vunpack.c.l.b16 %v375
    %v663 = vunpack.c.h.b16 %v375
    %v664 = vunpack.c.l.b16 %v376
    %v665 = vunpack.c.l.b16 %v377
    %v666 = vunpack.c.h.b16 %v377
    %v667 = vunpack.c.l.b16 %v378
    %v668 = vunpack.c.l.b16 %v379
    %v669 = vunpack.c.h.b16 %v379
    %v670 = vunpack.c.l.b16 %v380
    %v671 = vunpack.c.l.b16 %v381
    %v672 = vunpack.c.h.b16 %v381
    %v673 = vunpack.c.l.b16 %v382
    %v674 = vunpack.c.l.b16 %v383
    %v675 = vunpack.c.h.b16 %v383
    %v676 = vunpack.c.l.b16 %v384
    %v677 = vunpack.c.l.b16 %v385
    %v678 = vunpack.c.h.b16 %v385
    %v679 = vunpack.c.l.b16 %v386
    %v680 = vunpack.c.l.b16 %v387
    %v681 = vunpack.c.h.b16 %v387
    %v682 = vunpack.c.l.b16 %v388
    %v683 = vunpack.c.l.b16 %v389
    %v684 = vunpack.c.h.b16 %v389
    %v685 = vunpack.c.l.b16 %v390
    %v686 = vunpack.c.l.b16 %v391
    %v687 = vunpack.c.h.b16 %v391
    %v688 = vunpack.c.l.b16 %v392
    %v689 = vunpack.c.l.b16 %v393
    %v690 = vunpack.c.h.b16 %v393
    %v691 = vunpack.c.l.b16 %v394
    %v692 = vunpack.c.l.b16 %v395
    %v693 = vunpack.c.h.b16 %v395
    %v694 = vunpack.c.l.b16 %v396
    %v695 = vunpack.c.l.b16 %v397
    %v696 = vunpack.c.h.b16 %v397
    %v697 = vunpack.c.l.b16 %v398
    %v698 = vunpack.c.l.b16 %v399
    %v699 = vunpack.c.h.b16 %v399
    %v700 = vunpack.c.l.b16 %v400
    %v701 = vunpack.c.l.b16 %v401
    %v702 = vunpack.c.h.b16 %v401
    %v703 = vunpack.c.l.b16 %v402
    %v704 = vunpack.c.l.b16 %v403
    %v705 = vunpack.c.h.b16 %v403
    %v706 = vunpack.c.l.b16 %v404
    %v707 = vunpack.c.l.b16 %v405
    %v708 = vunpack.c.h.b16 %v405
    %v709 = vunpack.c.l.b16 %v406
    %v710 = vunpack.c.l.b16 %v407
    %v711 = vunpack.c.h.b16 %v407
    %v712 = vunpack.c.l.b16 %v408
    %v713 = vunpack.c.l.b16 %v409
    %v714 = vunpack.c.h.b16 %v409
    %v715 = vunpack.c.l.b16 %v410
    %v716 = vunpack.c.l.b16 %v411
    %v717 = vunpack.c.h.b16 %v411
    %v718 = vunpack.c.l.b16 %v412
    %v719 = vunpack.c.l.b16 %v413
    %v720 = vunpack.c.h.b16 %v413
    %v721 = vunpack.c.l.b16 %v414
    %v722 = vunpack.c.l.b16 %v415
    %v723 = vunpack.c.h.b16 %v415
    %v724 = vunpack.c.l.b16 %v416
    %v725 = vunpack.c.l.b16 %v417
    %v726 = vunpack.c.h.b16 %v417
    %v727 = vunpack.c.l.b16 %v418
    %v728 = vunpack.c.l.b16 %v419
    %v729 = vunpack.c.h.b16 %v419
    %v730 = vunpack.c.l.b16 %v420
    %v731 = vunpack.c.l.b16 %v421
    %v732 = vunpack.c.h.b16 %v421
    %v733 = vunpack.c.l.b16 %v422
    %v734 = vunpack.c.l.b16 %v423
    %v735 = vunpack.c.h.b16 %v423
    %v736 = vunpack.c.l.b16 %v424
    %v737 = vunpack.c.l.b16 %v425
    %v738 = vunpack.c.h.b16 %v425
    %v739 = vunpack.c.l.b16 %v426
    %v740 = vunpack.c.l.b16 %v427
    %v741 = vunpack.c.h.b16 %v427
    %v742 = vunpack.c.l.b16 %v428
    %v743 = vunpack.c.l.b16 %v429
    %v744 = vunpack.c.h.b16 %v429
    %v745 = vunpack.c.l.b16 %v430
    %v746 = vunpack.c.l.b16 %v431
    %v747 = vunpack.c.h.b16 %v431
    %v748 = vunpack.c.l.b16 %v432
    %v749 = vunpack.c.l.b16 %v433
    %v750 = vunpack.c.h.b16 %v433
    %v751 = vunpack.c.l.b16 %v434
    %v752 = vunpack.c.l.b16 %v435
    %v753 = vunpack.c.h.b16 %v435
    %v754 = vunpack.c.l.b16 %v436
    %v755 = vunpack.c.l.b16 %v437
    %v756 = vunpack.c.h.b16 %v437
    %v757 = vunpack.c.l.b16 %v438
    %v758 = vunpack.c.l.b16 %v439
    %v759 = vunpack.c.h.b16 %v439
    %v760 = vunpack.c.l.b16 %v440
    %v761 = vunpack.c.l.b16 %v441
    %v762 = vunpack.c.h.b16 %v441
    %v763 = vunpack.c.l.b16 %v442
    %v764 = vunpack.c.l.b16 %v443
    %v765 = vunpack.c.h.b16 %v443
    %v766 = vunpack.c.l.b16 %v444
    %v767 = vunpack.c.l.b16 %v445
    %v768 = vunpack.c.h.b16 %v445
    %v769 = vunpack.c.l.b16 %v446
    %v770 = vunpack.c.l.b16 %v447
    %v771 = vunpack.c.h.b16 %v447
    %v772 = vunpack.c.l.b16 %v448
    %v773 = vunpack.c.l.b16 %v449
    %v774 = vunpack.c.h.b16 %v449
    %v775 = vunpack.c.l.b16 %v450
    %v776 = vunpack.c.l.b16 %v451
    %v777 = vunpack.c.h.b16 %v451
    %v778 = vunpack.c.l.b16 %v452
    %v779 = vunpack.c.l.b16 %v453
    %v780 = vunpack.c.h.b16 %v453
    %v781 = vunpack.c.l.b16 %v454
    %v782 = vunpack.c.l.b16 %v455
    %v783 = vunpack.c.h.b16 %v455
    %v784 = vunpack.c.l.b16 %v456
    %v785 = vunpack.c.l.b16 %v457
    %v786 = vunpack.c.h.b16 %v457
    %v787 = vunpack.c.l.b16 %v458
    %v788 = vunpack.c.l.b16 %v459
    %v789 = vunpack.c.h.b16 %v459
    %v790 = vunpack.c.l.b16 %v460
    %v791 = vunpack.c.l.b16 %v461
    %v792 = vunpack.c.h.b16 %v461
    %v793 = vunpack.c.l.b16 %v462
    %v794 = vunpack.c.l.b16 %v463
    %v795 = vunpack.c.h.b16 %v463
    %v796 = vunpack.c.l.b16 %v464
    %v797 = vunpack.c.l.b16 %v465
    %v798 = vunpack.c.h.b16 %v465
    %v799 = vunpack.c.l.b16 %v466
    %v800 = vunpack.c.l.b16 %v467
    %v801 = vunpack.c.h.b16 %v467
    %v802 = vunpack.c.l.b16 %v468
    %v803 = vunpack.c.l.b16 %v469
    %v804 = vunpack.c.h.b16 %v469
    %v805 = vunpack.c.l.b16 %v470
    %v806 = vunpack.c.l.b16 %v471
    %v807 = vunpack.c.h.b16 %v471
    %v808 = vunpack.c.l.b16 %v472
    %v809 = vunpack.c.l.b16 %v473
    %v810 = vunpack.c.h.b16 %v473
    %v811 = vunpack.c.l.b16 %v474
    %v812 = vpack.c.b16 %v623, %v620
    %v813 = vpack.c.b16 %v624, %v621
    %v814 = vpack.c.b16 %v625, %v622
    %v815 = vpack.c.b16 %v629, %v626
    %v816 = vpack.c.b16 %v630, %v627
    %v817 = vpack.c.b16 %v631, %v628
    %v818 = vpack.c.b16 %v635, %v632
    %v819 = vpack.c.b16 %v636, %v633
    %v820 = vpack.c.b16 %v637, %v634
    %v821 = vpack.c.b16 %v641, %v638
    %v822 = vpack.c.b16 %v642, %v639
    %v823 = vpack.c.b16 %v643, %v640
    %v824 = vpack.c.b16 %v647, %v644
    %v825 = vpack.c.b16 %v648, %v645
    %v826 = vpack.c.b16 %v649, %v646
    %v827 = vpack.c.b16 %v653, %v650
    %v828 = vpack.c.b16 %v654, %v651
    %v829 = vpack.c.b16 %v655, %v652
    %v830 = vpack.c.b16 %v659, %v656
    %v831 = vpack.c.b16 %v660, %v657
    %v832 = vpack.c.b16 %v661, %v658
    %v833 = vpack.c.b16 %v665, %v662
    %v834 = vpack.c.b16 %v666, %v663
    %v835 = vpack.c.b16 %v667, %v664
    %v836 = vpack.c.b16 %v671, %v668
    %v837 = vpack.c.b16 %v672, %v669
    %v838 = vpack.c.b16 %v673, %v670
    %v839 = vpack.c.b16 %v677, %v674
    %v840 = vpack.c.b16 %v678, %v675
    %v841 = vpack.c.b16 %v679, %v676
    %v842 = vpack.c.b16 %v683, %v680
    %v843 = vpack.c.b16 %v684, %v681
    %v844 = vpack.c.b16 %v685, %v682
    %v845 = vpack.c.b16 %v689, %v686
    %v846 = vpack.c.b16 %v690, %v687
    %v847 = vpack.c.b16 %v691, %v688
    %v848 = vpack.c.b16 %v695, %v692
    %v849 = vpack.c.b16 %v696, %v693
    %v850 = vpack.c.b16 %v697, %v694
    %v851 = vpack.c.b16 %v701, %v698
    %v852 = vpack.c.b16 %v702, %v699
    %v853 = vpack.c.b16 %v703, %v700
    %v854 = vpack.c.b16 %v707, %v704
    %v855 = vpack.c.b16 %v708, %v705
    %v856 = vpack.c.b16 %v709, %v706
    %v857 = vpack.c.b16 %v713, %v710
    %v858 = vpack.c.b16 %v714, %v711
    %v859 = vpack.c.b16 %v715, %v712
    %v860 = vpack.c.b16 %v719, %v716
    %v861 = vpack.c.b16 %v720, %v717
    %v862 = vpack.c.b16 %v721, %v718
    %v863 = vpack.c.b16 %v725, %v722
    %v864 = vpack.c.b16 %v726, %v723
    %v865 = vpack.c.b16 %v727, %v724
    %v866 = vpack.c.b16 %v731, %v728
    %v867 = vpack.c.b16 %v732, %v729
    %v868 = vpack.c.b16 %v733, %v730
    %v869 = vpack.c.b16 %v737, %v734
    %v870 = vpack.c.b16 %v738, %v735
    %v871 = vpack.c.b16 %v739, %v736
    %v872 = vpack.c.b16 %v743, %v740
    %v873 = vpack.c.b16 %v744, %v741
    %v874 = vpack.c.b16 %v745, %v742
    %v875 = vpack.c.b16 %v749, %v746
    %v876 = vpack.c.b16 %v750, %v747
    %v877 = vpack.c.b16 %v751, %v748
    %v878 = vpack.c.b16 %v755, %v752
    %v879 = vpack.c.b16 %v756, %v753
    %v880 = vpack.c.b16 %v757, %v754
    %v881 = vpack.c.b16 %v761, %v758
    %v882 = vpack.c.b16 %v762, %v759
    %v883 = vpack.c.b16 %v763, %v760
    %v884 = vpack.c.b16 %v767, %v764
    %v885 = vpack.c.b16 %v768, %v765
    %v886 = vpack.c.b16 %v769, %v766
    %v887 = vpack.c.b16 %v773, %v770
    %v888 = vpack.c.b16 %v774, %v771
    %v889 = vpack.c.b16 %v775, %v772
    %v890 = vpack.c.b16 %v779, %v776
    %v891 = vpack.c.b16 %v780, %v777
    %v892 = vpack.c.b16 %v781, %v778
    %v893 = vpack.c.b16 %v785, %v782
    %v894 = vpack.c.b16 %v786, %v783
    %v895 = vpack.c.b16 %v787, %v784
    %v896 = vpack.c.b16 %v791, %v788
    %v897 = vpack.c.b16 %v792, %v789
    %v898 = vpack.c.b16 %v793, %v790
    %v899 = vpack.c.b16 %v797, %v794
    %v900 = vpack.c.b16 %v798, %v795
    %v901 = vpack.c.b16 %v799, %v796
    %v902 = vpack.c.b16 %v803, %v800
    %v903 = vpack.c.b16 %v804, %v801
    %v904 = vpack.c.b16 %v805, %v802
    %v905 = vpack.c.b16 %v809, %v806
    %v906 = vpack.c.b16 %v810, %v807
    %v907 = vpack.c.b16 %v811, %v808
    %1004 = vmatprep.subr.bf16.mxu0 %v813
    %1005 = vmatpush1.bf16.msra.mxu0 %v812
    %1006 = vmatprep.subr.bf16.mxu0 %v816
    %1007 = vmatpush1.bf16.msra.mxu0 %v815
    %1008 = vmatprep.subr.bf16.mxu0 %v819
    %1009 = vmatpush1.bf16.msra.mxu0 %v818
    %1010 = vmatprep.subr.bf16.mxu0 %v822
    %1011 = vmatpush1.bf16.msra.mxu0 %v821
    %1012 = vmatprep.subr.bf16.mxu0 %v825
    %1013 = vmatpush1.bf16.msra.mxu0 %v824
    %1014 = vmatprep.subr.bf16.mxu0 %v828
    %1015 = vmatpush1.bf16.msra.mxu0 %v827
    %1016 = vmatprep.subr.bf16.mxu0 %v831
    %1017 = vmatpush1.bf16.msra.mxu0 %v830
    %1018 = vmatprep.subr.bf16.mxu0 %v834
    %1019 = vmatpush1.bf16.msra.mxu0 %v833
    %1020 = vmatprep.subr.bf16.mxu0 %v837
    %1021 = vmatpush1.bf16.msra.mxu0 %v836
    %1022 = vmatprep.subr.bf16.mxu0 %v840
    %1023 = vmatpush1.bf16.msra.mxu0 %v839
    %1024 = vmatprep.subr.bf16.mxu0 %v843
    %1025 = vmatpush1.bf16.msra.mxu0 %v842
    %1026 = vmatprep.subr.bf16.mxu0 %v846
    %1027 = vmatpush1.bf16.msra.mxu0 %v845
    %1028 = vmatprep.subr.bf16.mxu0 %v849
    %1029 = vmatpush1.bf16.msra.mxu0 %v848
    %1030 = vmatprep.subr.bf16.mxu0 %v852
    %1031 = vmatpush1.bf16.msra.mxu0 %v851
    %1032 = vmatprep.subr.bf16.mxu0 %v855
    %1033 = vmatpush1.bf16.msra.mxu0 %v854
    %1034 = vmatprep.subr.bf16.mxu0 %v858
    %1035 = vmatpush1.bf16.msra.mxu0 %v857
    %1036 = vmatprep.mubr.bf16.mxu0 %v344
    %1037 = vmatmul.mubr.bf16.gmra.mrb[0].mxu0 %v343
    %v1038 = vpop.f32.mrb[0].mxu0
    %v1039 = vadd.f32 %v480, %v1038
    %v1040 = vpop.f32.mrb[0].mxu0
    %v1041 = vadd.f32 %v484, %v1040
    %v1042 = vpop.f32.mrb[0].mxu0
    %v1043 = vadd.f32 %v480, %v1042
    %v1044 = vpop.f32.mrb[0].mxu0
    %v1045 = vadd.f32 %v484, %v1044
    %1046 = vdwg.mxu0
    %1047 = vmatprep.subr.bf16.mxu0 %v861
    %1048 = vmatpush1.bf16.msra.mxu0 %v860
    %1049 = vmatprep.subr.bf16.mxu0 %v864
    %1050 = vmatpush1.bf16.msra.mxu0 %v863
    %1051 = vmatprep.subr.bf16.mxu0 %v867
    %1052 = vmatpush1.bf16.msra.mxu0 %v866
    %1053 = vmatprep.subr.bf16.mxu0 %v870
    %1054 = vmatpush1.bf16.msra.mxu0 %v869
    %1055 = vmatprep.subr.bf16.mxu0 %v873
    %1056 = vmatpush1.bf16.msra.mxu0 %v872
    %1057 = vmatprep.subr.bf16.mxu0 %v876
    %1058 = vmatpush1.bf16.msra.mxu0 %v875
    %1059 = vmatprep.subr.bf16.mxu0 %v879
    %1060 = vmatpush1.bf16.msra.mxu0 %v878
    %1061 = vmatprep.subr.bf16.mxu0 %v882
    %1062 = vmatpush1.bf16.msra.mxu0 %v881
    %1063 = vmatprep.subr.bf16.mxu0 %v885
    %1064 = vmatpush1.bf16.msra.mxu0 %v884
    %1065 = vmatprep.subr.bf16.mxu0 %v888
    %1066 = vmatpush1.bf16.msra.mxu0 %v887
    %1067 = vmatprep.subr.bf16.mxu0 %v891
    %1068 = vmatpush1.bf16.msra.mxu0 %v890
    %1069 = vmatprep.subr.bf16.mxu0 %v894
    %1070 = vmatpush1.bf16.msra.mxu0 %v893
    %1071 = vmatprep.subr.bf16.mxu0 %v897
    %1072 = vmatpush1.bf16.msra.mxu0 %v896
    %1073 = vmatprep.subr.bf16.mxu0 %v900
    %1074 = vmatpush1.bf16.msra.mxu0 %v899
    %1075 = vmatprep.subr.bf16.mxu0 %v903
    %1076 = vmatpush1.bf16.msra.mxu0 %v902
    %1077 = vmatprep.subr.bf16.mxu0 %v906
    %1078 = vmatpush1.bf16.msra.mxu0 %v905
    %1079 = vmatprep.mubr.bf16.mxu0 %v346
    %1080 = vmatmul.mubr.bf16.gmra.mrb[0].mxu0 %v345
    %v1081 = vpop.f32.mrb[0].mxu0
    %v1082 = vadd.f32 %v1039, %v1081
    %v1083 = vpop.f32.mrb[0].mxu0
    %v1084 = vadd.f32 %v1041, %v1083
    %v1085 = vpop.f32.mrb[0].mxu0
    %v1086 = vadd.f32 %v1043, %v1085
    %v1087 = vpop.f32.mrb[0].mxu0
    %v1088 = vadd.f32 %v1045, %v1087
    %1089 = vdwg.mxu0
    %1090 = vmatprep.subr.bf16.mxu0 0
    %1091 = vmatpush1.bf16.msra.mxu0 %v814
    %1092 = vmatprep.subr.bf16.mxu0 0
    %1093 = vmatpush1.bf16.msra.mxu0 %v817
    %1094 = vmatprep.subr.bf16.mxu0 0
    %1095 = vmatpush1.bf16.msra.mxu0 %v820
    %1096 = vmatprep.subr.bf16.mxu0 0
    %1097 = vmatpush1.bf16.msra.mxu0 %v823
    %1098 = vmatprep.subr.bf16.mxu0 0
    %1099 = vmatpush1.bf16.msra.mxu0 %v826
    %1100 = vmatprep.subr.bf16.mxu0 0
    %1101 = vmatpush1.bf16.msra.mxu0 %v829
    %1102 = vmatprep.subr.bf16.mxu0 0
    %1103 = vmatpush1.bf16.msra.mxu0 %v832
    %1104 = vmatprep.subr.bf16.mxu0 0
    %1105 = vmatpush1.bf16.msra.mxu0 %v835
    %1106 = vmatprep.subr.bf16.mxu0 0
    %1107 = vmatpush1.bf16.msra.mxu0 %v838
    %1108 = vmatprep.subr.bf16.mxu0 0
    %1109 = vmatpush1.bf16.msra.mxu0 %v841
    %1110 = vmatprep.subr.bf16.mxu0 0
    %1111 = vmatpush1.bf16.msra.mxu0 %v844
    %1112 = vmatprep.subr.bf16.mxu0 0
    %1113 = vmatpush1.bf16.msra.mxu0 %v847
    %1114 = vmatprep.subr.bf16.mxu0 0
    %1115 = vmatpush1.bf16.msra.mxu0 %v850
    %1116 = vmatprep.subr.bf16.mxu0 0
    %1117 = vmatpush1.bf16.msra.mxu0 %v853
    %1118 = vmatprep.subr.bf16.mxu0 0
    %1119 = vmatpush1.bf16.msra.mxu0 %v856
    %1120 = vmatprep.subr.bf16.mxu0 0
    %1121 = vmatpush1.bf16.msra.mxu0 %v859
    %1122 = vmatprep.mubr.bf16.mxu0 %v344
    %1123 = vmatmul.mubr.bf16.gmra.mrb[0].mxu0 %v343
    %v1124 = vpop.f32.mrb[0].mxu0
    %v1125 = vadd.f32 %v488, %v1124
    %v1126 = vpop.f32.mrb[0].mxu0
    %v1127 = vpop.f32.mrb[0].mxu0
    %v1128 = vadd.f32 %v488, %v1127
    %v1129 = vpop.f32.mrb[0].mxu0
    %1130 = vdwg.mxu0
    %1131 = vmatprep.subr.bf16.mxu0 0
    %1132 = vmatpush1.bf16.msra.mxu0 %v862
    %1133 = vmatprep.subr.bf16.mxu0 0
    %1134 = vmatpush1.bf16.msra.mxu0 %v865
    %1135 = vmatprep.subr.bf16.mxu0 0
    %1136 = vmatpush1.bf16.msra.mxu0 %v868
    %1137 = vmatprep.subr.bf16.mxu0 0
    %1138 = vmatpush1.bf16.msra.mxu0 %v871
    %1139 = vmatprep.subr.bf16.mxu0 0
    %1140 = vmatpush1.bf16.msra.mxu0 %v874
    %1141 = vmatprep.subr.bf16.mxu0 0
    %1142 = vmatpush1.bf16.msra.mxu0 %v877
    %1143 = vmatprep.subr.bf16.mxu0 0
    %1144 = vmatpush1.bf16.msra.mxu0 %v880
    %1145 = vmatprep.subr.bf16.mxu0 0
    %1146 = vmatpush1.bf16.msra.mxu0 %v883
    %1147 = vmatprep.subr.bf16.mxu0 0
    %1148 = vmatpush1.bf16.msra.mxu0 %v886
    %1149 = vmatprep.subr.bf16.mxu0 0
    %1150 = vmatpush1.bf16.msra.mxu0 %v889
    %1151 = vmatprep.subr.bf16.mxu0 0
    %1152 = vmatpush1.bf16.msra.mxu0 %v892
    %1153 = vmatprep.subr.bf16.mxu0 0
    %1154 = vmatpush1.bf16.msra.mxu0 %v895
    %1155 = vmatprep.subr.bf16.mxu0 0
    %1156 = vmatpush1.bf16.msra.mxu0 %v898
    %1157 = vmatprep.subr.bf16.mxu0 0
    %1158 = vmatpush1.bf16.msra.mxu0 %v901
    %1159 = vmatprep.subr.bf16.mxu0 0
    %1160 = vmatpush1.bf16.msra.mxu0 %v904
    %1161 = vmatprep.subr.bf16.mxu0 0
    %1162 = vmatpush1.bf16.msra.mxu0 %v907
    %1163 = vmatprep.mubr.bf16.mxu0 %v346
    %1164 = vmatmul.mubr.bf16.gmra.mrb[0].mxu0 %v345
    %v1165 = vpop.f32.mrb[0].mxu0
    %v1166 = vadd.f32 %v1125, %v1165
    %v1167 = vpop.f32.mrb[0].mxu0
    %v1168 = vpop.f32.mrb[0].mxu0
    %v1169 = vadd.f32 %v1128, %v1168
    %v1170 = vpop.f32.mrb[0].mxu0
    %1171 = vdwg.mxu0
    %v1172 = vmax.f32 %v1082, 0.0
    %v1173 = vmax.f32 %v1084, 0.0
    %v1174 = vmax.f32 %v1166, 0.0
    %v1175 = vmax.f32 %v1086, 0.0
    %v1176 = vmax.f32 %v1088, 0.0
    %v1177 = vmax.f32 %v1169, 0.0
    %v1178 = vld [vmem:[%s7] sm:$0x7]
    %v1180 = vlaneseq
    %v1181 = vshrl.u32 %v1180, 7
    %v1182 = vsub.s32 0, %v1181
    %v1183 = vrot.slane %v1178, %v1182
    %v1184 = vlaneseq
    %v1185 = vshrl.u32 %v1184, 7
    %v1186 = vsub.s32 1, %v1185
    %v1187 = vrot.slane %v1178, %v1186
    %v1188 = vlaneseq
    %v1189 = vshrl.u32 %v1188, 7
    %v1190 = vsub.s32 2, %v1189
    %v1191 = vrot.slane %v1178, %v1190
    %v1195 = vmul.f32 %v1172, %v1183
    %v1196 = vmul.f32 %v1173, %v1187
    %v1197 = vmul.f32 %v1174, %v1191
    %v1198 = vmul.f32 %v1175, %v1183
    %v1199 = vmul.f32 %v1176, %v1187
    %v1200 = vmul.f32 %v1177, %v1191
    %v1201 = vadd.f32 %v1195, %v1196
    %v1202 = vadd.f32 %v1201, %v1197
    %1203 = vadd.xlane.f32.xlu0 %v1202
    %v1204 = vpop.xlane.xlu0 %1203
    %v1205 = vadd.f32 %v1198, %v1199
    %v1206 = vadd.f32 %v1205, %v1200
    %1207 = vadd.xlane.f32.xlu0 %v1206
    %v1208 = vpop.xlane.xlu0 %1207
    %s1209 = sld [smem:[#allocation2]]
    %v1210 = vstv %s1209
    %v1211 = vadd.f32 %v1204, %v1210
    %v1212 = vadd.f32 %v1208, %v1210
    %v1215 = vlaneseq
    %v1216 = vand.u32 %v1215, 127
    %v1217 = vlaneseq
    %v1218 = vshrl.u32 %v1217, 7
    %v1219 = vsub.s32 %v1216, %v1218
    %v1220 = vrot.slane %v1211, %v1219
    %v1221 = vadd.s32 %v1216, 4294967288
    %v1222 = vlaneseq
    %v1223 = vshrl.u32 %v1222, 7
    %v1224 = vsub.s32 %v1221, %v1223
    %v1225 = vrot.slane %v1212, %v1224
    %vm1226 = vcmask 130112
    %v1227 = vsel %vm1226, %v1225, %v1220
    %vm1229 = vcmask 122880
    %1230 = vst.msk [vmem:[#allocation8] sm:$0x1] %vm1229, %v1227
    // Predicated region
    $region46: #{tpu_custom_call.1} parent=1 // pred_check
      _
    $region47: #{tpu_custom_call.1} parent=1 // pred_check_branch
      %1232 = sbr.rel (0) target = $region49
    $region48: #{tpu_custom_call.1} parent=1 // pred_region
      %s1234 = ssub.s32 16, 16
      %1235 = vsyncadd [#allocation5], %s1234
      %s1237 = sshll.u32 [#allocation8], 4
      %s1238 = int_to_ptr.vmem [resolvable:$true] %s1237
      %1240 = dma.vmem_to_hbm [thread:$0]  %s1238, 16, %s9, [#allocation5]
    $region49: #{tpu_custom_call.1} parent=1 // pred_fallthru
      _
    // Predicated region
    $region50: #{tpu_custom_call.1} parent=1 // pred_check
      _
    $region51: #{tpu_custom_call.1} parent=1 // pred_check_branch
      %1242 = sbr.rel (0) target = $region53
    $region52: #{tpu_custom_call.1} parent=1 // pred_region
      %1243 = dma.done [#allocation5], 16
    $region53: #{tpu_custom_call.1} parent=1 // pred_fallthru
      _
    %1244 = vsyncpa [#allocation4], 1
    %1245 = vsyncpa [#allocation7], 1
    %1246 = vsyncpa [#allocation5], 1

</llo_original>
